<compile_context>
chip_gen: v7x
topology: tpu7x:2x2x1
jax: 0.10.0
libtpu: 0.0.40
codegen_flags: <defaults>
</compile_context>

<pallas_src>
import functools

import jax
import jax.numpy as jnp
from jax import lax
from jax.experimental import pallas as pl
from jax.experimental.pallas import tpu as pltpu


# ------------------------------- Pallas kernel -------------------------------

def mha_kernel(x_ref, wqkv_ref, bqkv_ref, wp_ref, bp_ref, o_ref, *,
               head_count, head_size):
    _, T, C = x_ref.shape
    H, hs = head_count, head_size
    Hs = H * hs

    x = x_ref[0]                                          # (T, C) bf16

    # (1) Fused QKV projection: one lane-dense MXU matmul, f32 accumulation.
    qkv = jnp.dot(x, wqkv_ref[...], preferred_element_type=jnp.float32)
    qkv = qkv + bqkv_ref[...]                             # (T, 3*Hs) f32

    # Fold 1/sqrt(hs) into q: O(T*Hs) multiplies instead of O(H*T^2).
    scale = float(hs) ** -0.5

    # Split heads from the lane dim into a leading batch dim (H, T, hs).
    def heads(base):
        return jnp.stack(
            [qkv[:, base + h * hs: base + (h + 1) * hs] for h in range(H)],
            axis=0)

    qh = (heads(0) * scale).astype(jnp.bfloat16)          # (H, T, hs)
    kh = heads(Hs).astype(jnp.bfloat16)
    vh = heads(2 * Hs).astype(jnp.bfloat16)

    # (2) Causal attention, batched over heads on the leading dim.
    s = jnp.einsum('htd,hsd->hts', qh, kh,
                   preferred_element_type=jnp.float32)    # (H, T, T) f32
    row = lax.broadcasted_iota(jnp.int32, (T, T), 0)
    col = lax.broadcasted_iota(jnp.int32, (T, T), 1)
    s = jnp.where((row >= col)[None, :, :], s, -1e30)     # finite fill on f32

    m = jnp.max(s, axis=-1, keepdims=True)
    p = jnp.exp(s - m)                                    # unnormalized probs
    l = jnp.sum(p, axis=-1, keepdims=True)                # (H, T, 1) f32

    av = jnp.einsum('hts,hsd->htd', p.astype(jnp.bfloat16), vh,
                    preferred_element_type=jnp.float32)   # (H, T, hs) f32
    # Fold the softmax denominator into av (EUP reciprocal; O(T*hs) muls).
    av = av * pl.reciprocal(l, approx=True)

    # (3) Merge heads back on the lane dim; ONE (T, Hs) @ (Hs, C) projection.
    av2 = jnp.concatenate([av[h] for h in range(H)], axis=-1)
    y = jnp.dot(av2.astype(jnp.bfloat16), wp_ref[...],
                preferred_element_type=jnp.float32) + bp_ref[...]

    # NOTE: both dropout layers are identity in eval mode.
    o_ref[0] = y


# --------------------------------- wrapper -----------------------------------

def multi_head_attention_dec(x, params, head_count, head_size):
    B, T, C = x.shape
    H, hs = head_count, head_size
    Hs = H * hs

    # Host-side (free) re-layout, done once: fuse q/k/v weights so the
    # in-kernel projection is a single matmul; cast inputs/weights to bf16.
    wqkv = jnp.concatenate(
        [params["wq"], params["wk"], params["wv"]], axis=1).astype(jnp.bfloat16)
    bqkv = jnp.concatenate(
        [params["bq"], params["bk"], params["bv"]], axis=0
    ).reshape(1, 3 * Hs).astype(jnp.float32)
    wp = params["wproj"].astype(jnp.bfloat16)                 # (Hs, C)
    bp = params["bproj"].reshape(1, C).astype(jnp.float32)    # (1, C)
    xb = x.astype(jnp.bfloat16)

    return pl.pallas_call(
        functools.partial(mha_kernel, head_count=H, head_size=hs),
        out_shape=jax.ShapeDtypeStruct((B, T, C), jnp.float32),
        grid=(B,),                                            # parallel batch axis
        in_specs=[
            pl.BlockSpec((1, T, C), lambda b: (b, 0, 0)),     # x: streamed
            pl.BlockSpec((C, 3 * Hs), lambda b: (0, 0)),      # resident weights
            pl.BlockSpec((1, 3 * Hs), lambda b: (0, 0)),
            pl.BlockSpec((Hs, C), lambda b: (0, 0)),
            pl.BlockSpec((1, C), lambda b: (0, 0)),
        ],
        out_specs=pl.BlockSpec((1, T, C), lambda b: (b, 0, 0)),
        compiler_params=pltpu.CompilerParams(
            dimension_semantics=("parallel",),
            vmem_limit_bytes=32 * 1024 * 1024,
        ),
    )(xb, wqkv, bqkv, wp, bp)


# ------------------------- pure-JAX f32 reference ----------------------------

def reference_mha(x, params, head_count, head_size):
    B, T, C = x.shape
    H, hs = head_count, head_size
    q = x @ params["wq"] + params["bq"]
    k = x @ params["wk"] + params["bk"]
    v = x @ params["wv"] + params["bv"]
    q = q.reshape(B, T, H, hs).transpose(0, 2, 1, 3)
    k = k.reshape(B, T, H, hs).transpose(0, 2, 1, 3)
    v = v.reshape(B, T, H, hs).transpose(0, 2, 1, 3)
    s = jnp.einsum('bhtd,bhsd->bhts', q, k) * (float(hs) ** -0.5)
    causal = jnp.tril(jnp.ones((T, T), bool))
    s = jnp.where(causal, s, -jnp.inf)
    p = jax.nn.softmax(s, axis=-1)
    av = jnp.einsum('bhts,bhsd->bhtd', p, v)
    av = av.transpose(0, 2, 1, 3).reshape(B, T, H * hs)
    return av @ params["wproj"] + params["bproj"]


# -------------------------------- parameters ---------------------------------

def init_params(key, n_embed, head_count, head_size):
    C = n_embed
    Hs = head_count * head_size
    ks = jax.random.split(key, 8)

    def lin(kw, kb, fan_in, fan_out):
        bound = 1.0 / (fan_in ** 0.5)
        w = jax.random.uniform(kw, (fan_in, fan_out), jnp.float32, -bound, bound)
        b = jax.random.uniform(kb, (fan_out,), jnp.float32, -bound, bound)
        return w, b

    wq, bq = lin(ks[0], ks[1], C, Hs)
    wk, bk = lin(ks[2], ks[3], C, Hs)
    wv, bv = lin(ks[4], ks[5], C, Hs)
    wp, bp = lin(ks[6], ks[7], Hs, C)
    return dict(wq=wq, bq=bq, wk=wk, bk=bk, wv=wv, bv=bv, wproj=wp, bproj=bp)


# ----------------------------------- main -------------------------------------

if __name__ == "__main__":
    # module-consistent small shapes
    n_embed, head_count, block_size = 32, 4, 8
    head_size = n_embed // head_count
    B, T = 2, block_size

    key = jax.random.PRNGKey(0)
    k_param, k_x = jax.random.split(key)
    params = init_params(k_param, n_embed, head_count, head_size)
    x = jax.random.normal(k_x, (B, T, n_embed), dtype=jnp.float32)

    out = multi_head_attention_dec(x, params, head_count, head_size)
    out = jax.block_until_ready(out)

    assert out.shape == (B, T, n_embed) and out.dtype == jnp.float32
    ref = reference_mha(x, params, head_count, head_size)
    err = float(jnp.max(jnp.abs(out - ref)))
    # bf16 MXU inputs + approx reciprocal => ~1e-3 relative deviation expected.
    assert err < 5e-2, f"max abs error vs f32 reference: {err}"
    print("KERNEL_OK")
</pallas_src>

<mosaic_0001>
module attributes {stable_mosaic.version = 11 : i64} {
  func.func @mha_kernel(%arg0: i32, %arg1: memref<1x8x32xbf16, #tpu.memory_space<vmem>>, %arg2: memref<32x96xbf16, #tpu.memory_space<vmem>>, %arg3: memref<1x96xf32, #tpu.memory_space<vmem>>, %arg4: memref<32x32xbf16, #tpu.memory_space<vmem>>, %arg5: memref<1x32xf32, #tpu.memory_space<vmem>>, %arg6: memref<1x8x32xf32, #tpu.memory_space<vmem>>) attributes {dimension_semantics = [#tpu.dimension_semantics<parallel>], iteration_bounds = array<i64: 2>, scalar_prefetch = 0 : i64, scratch_operands = 0 : i64, tpu.core_type = #tpu.core_type<tc>, window_params = [{transform_indices = @transform_0, window_bounds = array<i64: 1, 8, 32>}, {pipeline_mode = #tpu.pipeline_mode<synchronous>, transform_indices = @transform_1, window_bounds = array<i64: 32, 96>}, {pipeline_mode = #tpu.pipeline_mode<synchronous>, transform_indices = @transform_2, window_bounds = array<i64: 1, 96>}, {pipeline_mode = #tpu.pipeline_mode<synchronous>, transform_indices = @transform_3, window_bounds = array<i64: 32, 32>}, {pipeline_mode = #tpu.pipeline_mode<synchronous>, transform_indices = @transform_4, window_bounds = array<i64: 1, 32>}, {transform_indices = @transform_5, window_bounds = array<i64: 1, 8, 32>}]} {
    %c0 = arith.constant 0 : index
    %c0_0 = arith.constant 0 : index
    %c0_1 = arith.constant 0 : index
    %0 = vector.load %arg1[%c0, %c0_0, %c0_1] : memref<1x8x32xbf16, #tpu.memory_space<vmem>>, vector<1x8x32xbf16>
    %1 = vector.shape_cast %0 : vector<1x8x32xbf16> to vector<8x32xbf16>
    %c0_2 = arith.constant 0 : index
    %c0_3 = arith.constant 0 : index
    %2 = vector.load %arg2[%c0_2, %c0_3] : memref<32x96xbf16, #tpu.memory_space<vmem>>, vector<32x96xbf16>
    %cst = arith.constant dense<0.000000e+00> : vector<8x96xf32>
    %3 = tpu.matmul %1, %2, %cst {dimension_numbers = #tpu.dot_dimension_numbers<[1], [0], [0], [1], [0, 0, 1, 1], [], []>} : vector<8x32xbf16>, vector<32x96xbf16>, vector<8x96xf32> -> vector<8x96xf32>
    %c0_4 = arith.constant 0 : index
    %c0_5 = arith.constant 0 : index
    %4 = vector.load %arg3[%c0_4, %c0_5] : memref<1x96xf32, #tpu.memory_space<vmem>>, vector<1x96xf32>
    %5 = vector.broadcast %4 : vector<1x96xf32> to vector<8x96xf32>
    %6 = arith.addf %3, %5 : vector<8x96xf32>
    %7 = vector.extract_strided_slice %6 {offsets = [0, 0], sizes = [8, 8], strides = [1, 1]} : vector<8x96xf32> to vector<8x8xf32>
    %8 = vector.extract_strided_slice %6 {offsets = [0, 8], sizes = [8, 8], strides = [1, 1]} : vector<8x96xf32> to vector<8x8xf32>
    %9 = vector.extract_strided_slice %6 {offsets = [0, 16], sizes = [8, 8], strides = [1, 1]} : vector<8x96xf32> to vector<8x8xf32>
    %10 = vector.extract_strided_slice %6 {offsets = [0, 24], sizes = [8, 8], strides = [1, 1]} : vector<8x96xf32> to vector<8x8xf32>
    %11 = vector.shape_cast %7 : vector<8x8xf32> to vector<1x8x8xf32>
    %12 = vector.shape_cast %8 : vector<8x8xf32> to vector<1x8x8xf32>
    %13 = vector.shape_cast %9 : vector<8x8xf32> to vector<1x8x8xf32>
    %14 = vector.shape_cast %10 : vector<8x8xf32> to vector<1x8x8xf32>
    %15 = tpu.concatenate %11, %12, %13, %14 in 0 : vector<1x8x8xf32>, vector<1x8x8xf32>, vector<1x8x8xf32>, vector<1x8x8xf32> -> vector<4x8x8xf32>
    %cst_6 = arith.constant 0.353553385 : f32
    %16 = vector.broadcast %cst_6 : f32 to vector<4x8x8xf32>
    %17 = arith.mulf %15, %16 : vector<4x8x8xf32>
    %18 = arith.truncf %17 : vector<4x8x8xf32> to vector<4x8x8xbf16>
    %19 = vector.extract_strided_slice %6 {offsets = [0, 32], sizes = [8, 8], strides = [1, 1]} : vector<8x96xf32> to vector<8x8xf32>
    %20 = vector.extract_strided_slice %6 {offsets = [0, 40], sizes = [8, 8], strides = [1, 1]} : vector<8x96xf32> to vector<8x8xf32>
    %21 = vector.extract_strided_slice %6 {offsets = [0, 48], sizes = [8, 8], strides = [1, 1]} : vector<8x96xf32> to vector<8x8xf32>
    %22 = vector.extract_strided_slice %6 {offsets = [0, 56], sizes = [8, 8], strides = [1, 1]} : vector<8x96xf32> to vector<8x8xf32>
    %23 = vector.shape_cast %19 : vector<8x8xf32> to vector<1x8x8xf32>
    %24 = vector.shape_cast %20 : vector<8x8xf32> to vector<1x8x8xf32>
    %25 = vector.shape_cast %21 : vector<8x8xf32> to vector<1x8x8xf32>
    %26 = vector.shape_cast %22 : vector<8x8xf32> to vector<1x8x8xf32>
    %27 = tpu.concatenate %23, %24, %25, %26 in 0 : vector<1x8x8xf32>, vector<1x8x8xf32>, vector<1x8x8xf32>, vector<1x8x8xf32> -> vector<4x8x8xf32>
    %28 = arith.truncf %27 : vector<4x8x8xf32> to vector<4x8x8xbf16>
    %29 = vector.extract_strided_slice %6 {offsets = [0, 64], sizes = [8, 8], strides = [1, 1]} : vector<8x96xf32> to vector<8x8xf32>
    %30 = vector.extract_strided_slice %6 {offsets = [0, 72], sizes = [8, 8], strides = [1, 1]} : vector<8x96xf32> to vector<8x8xf32>
    %31 = vector.extract_strided_slice %6 {offsets = [0, 80], sizes = [8, 8], strides = [1, 1]} : vector<8x96xf32> to vector<8x8xf32>
    %32 = vector.extract_strided_slice %6 {offsets = [0, 88], sizes = [8, 8], strides = [1, 1]} : vector<8x96xf32> to vector<8x8xf32>
    %33 = vector.shape_cast %29 : vector<8x8xf32> to vector<1x8x8xf32>
    %34 = vector.shape_cast %30 : vector<8x8xf32> to vector<1x8x8xf32>
    %35 = vector.shape_cast %31 : vector<8x8xf32> to vector<1x8x8xf32>
    %36 = vector.shape_cast %32 : vector<8x8xf32> to vector<1x8x8xf32>
    %37 = tpu.concatenate %33, %34, %35, %36 in 0 : vector<1x8x8xf32>, vector<1x8x8xf32>, vector<1x8x8xf32>, vector<1x8x8xf32> -> vector<4x8x8xf32>
    %38 = arith.truncf %37 : vector<4x8x8xf32> to vector<4x8x8xbf16>
    "tpu.trace_start"() <{level = 10 : i32, message = "htd,hsd->hts"}> : () -> ()
    %cst_7 = arith.constant dense<0.000000e+00> : vector<4x8x8xf32>
    %39 = tpu.matmul %18, %28, %cst_7 {dimension_numbers = #tpu.dot_dimension_numbers<[2], [2], [1], [1], [0, 0, 0, 1, 1, 1], [0], [0]>} : vector<4x8x8xbf16>, vector<4x8x8xbf16>, vector<4x8x8xf32> -> vector<4x8x8xf32>
    "tpu.trace_stop"() : () -> ()
    %40 = tpu.iota {dimensions = array<i32: 0>} : vector<8x8xi32>
    %41 = tpu.iota {dimensions = array<i32: 1>} : vector<8x8xi32>
    %42 = arith.cmpi sge, %40, %41 : vector<8x8xi32>
    %43 = vector.shape_cast %42 : vector<8x8xi1> to vector<1x8x8xi1>
    %cst_8 = arith.constant -1.000000e+30 : f32
    %44 = vector.shape_cast %43 : vector<1x8x8xi1> to vector<1x8x8xi1>
    %45 = vector.broadcast %44 : vector<1x8x8xi1> to vector<4x8x8xi1>
    %46 = vector.broadcast %cst_8 : f32 to vector<4x8x8xf32>
    %47 = arith.select %45, %39, %46 : vector<4x8x8xi1>, vector<4x8x8xf32>
    %cst_9 = arith.constant dense<0xFF800000> : vector<4x8xf32>
    %48 = vector.multi_reduction <maximumf>, %47, %cst_9 [2] : vector<4x8x8xf32> to vector<4x8xf32>
    %49 = vector.shape_cast %48 : vector<4x8xf32> to vector<4x8x1xf32>
    %50 = vector.broadcast %49 : vector<4x8x1xf32> to vector<4x8x8xf32>
    %51 = arith.subf %47, %50 : vector<4x8x8xf32>
    %52 = math.exp %51 : vector<4x8x8xf32>
    %cst_10 = arith.constant dense<0.000000e+00> : vector<4x8xf32>
    %53 = vector.multi_reduction <add>, %52, %cst_10 [2] : vector<4x8x8xf32> to vector<4x8xf32>
    %54 = vector.shape_cast %53 : vector<4x8xf32> to vector<4x8x1xf32>
    %55 = arith.truncf %52 : vector<4x8x8xf32> to vector<4x8x8xbf16>
    "tpu.trace_start"() <{level = 10 : i32, message = "hts,hsd->htd"}> : () -> ()
    %cst_11 = arith.constant dense<0.000000e+00> : vector<4x8x8xf32>
    %56 = tpu.matmul %55, %38, %cst_11 {dimension_numbers = #tpu.dot_dimension_numbers<[2], [1], [1], [2], [0, 0, 0, 1, 1, 2], [0], [0]>} : vector<4x8x8xbf16>, vector<4x8x8xbf16>, vector<4x8x8xf32> -> vector<4x8x8xf32>
    "tpu.trace_stop"() : () -> ()
    %57 = tpu.reciprocal %54 {approx = true} : vector<4x8x1xf32> -> vector<4x8x1xf32>
    %58 = vector.broadcast %57 : vector<4x8x1xf32> to vector<4x8x8xf32>
    %59 = arith.mulf %56, %58 : vector<4x8x8xf32>
    %60 = vector.extract_strided_slice %59 {offsets = [0, 0, 0], sizes = [1, 8, 8], strides = [1, 1, 1]} : vector<4x8x8xf32> to vector<1x8x8xf32>
    %61 = vector.shape_cast %60 : vector<1x8x8xf32> to vector<8x8xf32>
    %62 = vector.extract_strided_slice %59 {offsets = [1, 0, 0], sizes = [1, 8, 8], strides = [1, 1, 1]} : vector<4x8x8xf32> to vector<1x8x8xf32>
    %63 = vector.shape_cast %62 : vector<1x8x8xf32> to vector<8x8xf32>
    %64 = vector.extract_strided_slice %59 {offsets = [2, 0, 0], sizes = [1, 8, 8], strides = [1, 1, 1]} : vector<4x8x8xf32> to vector<1x8x8xf32>
    %65 = vector.shape_cast %64 : vector<1x8x8xf32> to vector<8x8xf32>
    %66 = vector.extract_strided_slice %59 {offsets = [3, 0, 0], sizes = [1, 8, 8], strides = [1, 1, 1]} : vector<4x8x8xf32> to vector<1x8x8xf32>
    %67 = vector.shape_cast %66 : vector<1x8x8xf32> to vector<8x8xf32>
    %68 = tpu.concatenate %61, %63, %65, %67 in 1 : vector<8x8xf32>, vector<8x8xf32>, vector<8x8xf32>, vector<8x8xf32> -> vector<8x32xf32>
    %69 = arith.truncf %68 : vector<8x32xf32> to vector<8x32xbf16>
    %c0_12 = arith.constant 0 : index
    %c0_13 = arith.constant 0 : index
    %70 = vector.load %arg4[%c0_12, %c0_13] : memref<32x32xbf16, #tpu.memory_space<vmem>>, vector<32x32xbf16>
    %cst_14 = arith.constant dense<0.000000e+00> : vector<8x32xf32>
    %71 = tpu.matmul %69, %70, %cst_14 {dimension_numbers = #tpu.dot_dimension_numbers<[1], [0], [0], [1], [0, 0, 1, 1], [], []>} : vector<8x32xbf16>, vector<32x32xbf16>, vector<8x32xf32> -> vector<8x32xf32>
    %c0_15 = arith.constant 0 : index
    %c0_16 = arith.constant 0 : index
    %72 = vector.load %arg5[%c0_15, %c0_16] : memref<1x32xf32, #tpu.memory_space<vmem>>, vector<1x32xf32>
    %73 = vector.broadcast %72 : vector<1x32xf32> to vector<8x32xf32>
    %74 = arith.addf %71, %73 : vector<8x32xf32>
    %c0_17 = arith.constant 0 : index
    %c0_18 = arith.constant 0 : index
    %c0_19 = arith.constant 0 : index
    %75 = vector.load %arg6[%c0_17, %c0_18, %c0_19] : memref<1x8x32xf32, #tpu.memory_space<vmem>>, vector<1x8x32xf32>
    %76 = vector.shape_cast %75 : vector<1x8x32xf32> to vector<8x32xf32>
    %77 = vector.shape_cast %74 : vector<8x32xf32> to vector<1x8x32xf32>
    tpu.vector_store %arg6[%c0_17, %c0_18, %c0_19], %77 {strides = array<i32>} : memref<1x8x32xf32, #tpu.memory_space<vmem>>, vector<1x8x32xf32>,
    return
  }
  func.func @transform_0(%arg0: i32) -> (i32, i32, i32) {
    %c0_i32 = arith.constant 0 : i32
    %c0_i32_0 = arith.constant 0 : i32
    %c0_i32_1 = arith.constant 0 : i32
    return %arg0, %c0_i32, %c0_i32_0 : i32, i32, i32
  }
  func.func @transform_1(%arg0: i32) -> (i32, i32) {
    %c0_i32 = arith.constant 0 : i32
    %c0_i32_0 = arith.constant 0 : i32
    %c0_i32_1 = arith.constant 0 : i32
    return %c0_i32, %c0_i32_0 : i32, i32
  }
  func.func @transform_2(%arg0: i32) -> (i32, i32) {
    %c0_i32 = arith.constant 0 : i32
    %c0_i32_0 = arith.constant 0 : i32
    %c0_i32_1 = arith.constant 0 : i32
    return %c0_i32, %c0_i32_0 : i32, i32
  }
  func.func @transform_3(%arg0: i32) -> (i32, i32) {
    %c0_i32 = arith.constant 0 : i32
    %c0_i32_0 = arith.constant 0 : i32
    %c0_i32_1 = arith.constant 0 : i32
    return %c0_i32, %c0_i32_0 : i32, i32
  }
  func.func @transform_4(%arg0: i32) -> (i32, i32) {
    %c0_i32 = arith.constant 0 : i32
    %c0_i32_0 = arith.constant 0 : i32
    %c0_i32_1 = arith.constant 0 : i32
    return %c0_i32, %c0_i32_0 : i32, i32
  }
  func.func @transform_5(%arg0: i32) -> (i32, i32, i32) {
    %c0_i32 = arith.constant 0 : i32
    %c0_i32_0 = arith.constant 0 : i32
    %c0_i32_1 = arith.constant 0 : i32
    return %arg0, %c0_i32, %c0_i32_0 : i32, i32, i32
  }
}

</mosaic_0001>

<llo_original>
// kernel: tpu_custom_call.1
$region0: #{tpu_custom_call.1}
  #allocation0 [shape = 'u32[]', space=smem, size = 0x4, offset = 0x4, fixed_abs, tag = 'smem constant byte address 0x4 - core index']
  #allocation1 [shape = 'u32[144,128]{1,0:T(1,128)}', space=vmem, size = 0x12000, scoped, tag = 'internal scratch']
  %s0 = inlined_call_operand.hbm [shape: bf16[2,8,32], index: 0, kind: input, shape index: {}]
  %s1 = inlined_call_operand.hbm [shape: bf16[32,96], index: 1, kind: input, shape index: {}]
  %s2 = inlined_call_operand.vmem [shape: f32[1,96], index: 2, kind: input, shape index: {}]
  %s3 = inlined_call_operand.hbm [shape: bf16[32,32], index: 3, kind: input, shape index: {}]
  %s4 = inlined_call_operand.vmem [shape: f32[1,32], index: 4, kind: input, shape index: {}]
  %s5 = inlined_call_operand.hbm [shape: f32[2,8,32], index: 5, kind: output, shape index: {}]
  %s6 = sld [smem:[#allocation0]]
  $region65: #{tpu_custom_call.1} parent=0
    _
  %s8 = ssub.s32 1, %s6
  %s9 = scalar_select 0, %s8, %s6
  $region1: #{tpu_custom_call.1} parent=0
    #allocation2 [shape = 'u8[4096]{0}', space=vmem, size = 0x1000, scoped, tag = 'input window, operand 0']
    #allocation3 [shape = 's32[2]{0}', space=sflag, size = 0x8, scoped, tag = 'scoped memory for tpu_custom_call.1']
    #allocation4 [shape = 's32[2]{0}', space=sflag, size = 0x8, scoped, tag = 'scoped memory for tpu_custom_call.1']
    #allocation5 [shape = 'u8[8192]{0}', space=vmem, size = 0x2000, scoped, tag = 'input window, operand 1, single buffered']
    #allocation6 [shape = 's32[1]{0}', space=sflag, size = 0x4, scoped, tag = 'scoped memory for tpu_custom_call.1']
    #allocation7 [shape = 'u8[8192]{0}', space=vmem, size = 0x2000, scoped, tag = 'input window, operand 3, single buffered']
    #allocation8 [shape = 'u8[8192]{0}', space=vmem, size = 0x2000, scoped, tag = 'output window, operand 0']
    %10 = vsyncpa [#allocation3], 0
    %s11 = scalar_lea.sflag [#allocation3], 1
    %12 = vsyncpa %s11, 0
    %13 = vsyncpa [#allocation6], 0
    %14 = vsyncpa [#allocation4], 0
    %s15 = scalar_lea.sflag [#allocation4], 1
    %16 = vsyncpa %s15, 0
    loop: start=0, step=1, limit=4
    $region2: #{tpu_custom_call.1} parent=1 // loop_pre_header
      _
    $region3: #{tpu_custom_call.1} parent=1 // loop_header
      %s18 = sphi 0, %s22
      %p19 = scmp.ge.s32.totalorder %s18, 4
      %s28 = sphi 0, %s30
      %s31 = sphi 0, %s28
      %s32 = sphi 0, %s31
      %s48 = sphi 0, %s32
      %s52 = sphi 0, %s52
      %s54 = sphi 0, %s52
      %s55 = sphi 0, %s54
      %s69 = sphi 0, %s55
      %s73 = sphi 0, %s73
      %s75 = sphi 0, %s73
      %s76 = sphi 0, %s75
      %s90 = sphi 0, %s76
      %s94 = sphi 0, %s94
      %s96 = sphi 0, %s94
      %s97 = sphi 0, %s96
      %s111 = sphi 0, %s97
      %s115 = sphi 0, %s115
      %s117 = sphi 0, %s115
      %s118 = sphi 0, %s117
      %s132 = sphi 0, %s118
      %s138 = sphi 0, %s140
      %s141 = sphi 0, %s138
      %s142 = sphi 0, %s141
      %s158 = sphi 0, %s142
    $region4: #{tpu_custom_call.1} parent=1 // loop_header_branch
      %21 = sbr.rel (%p19) target = $region8
    $region5: #{tpu_custom_call.1} parent=1 // loop_body
      %s23 = ssub.s32 %s18, 1
      %s24 = ssub.s32 %s18, 2
      %s25 = sadd.s32 %s18, 1
      %s26 = ssub.s32 %s18, %s25
      %p27 = scmp.eq.s32.totalorder %s26, 0
      %s29 = sadd.s32 %s28, 1
      %s30 = scalar_select %p27, %s28, %s29
      %p33 = pneg %p27
      %p34 = scmp.eq.s32.totalorder %s18, 1
      %p35 = por %p33, %p34
      %p36 = scmp.ne.s32.totalorder %s28, %s31
      %p37 = scmp.eq.s32.totalorder %s18, 0
      %p38 = por %p36, %p37
      %p39 = scmp.ne.s32.totalorder %s28, %s31
      %p40 = scmp.eq.s32.totalorder %s23, 1
      %p41 = por %p39, %p40
      %p42 = scmp.ne.s32.totalorder %s31, %s32
      %p43 = scmp.eq.s32.totalorder %s23, 0
      %p44 = por %p42, %p43
      %p45 = scmp.ne.s32.totalorder %s31, %s32
      %p46 = scmp.eq.s32.totalorder %s24, 1
      %p47 = por %p45, %p46
      %p49 = scmp.ne.s32.totalorder %s32, %s48
      %p50 = scmp.eq.s32.totalorder %s24, 0
      %p51 = por %p49, %p50
      %s53 = sadd.s32 %s52, 1
      %p56 = scmp.eq.s32.totalorder %s18, 1
      %p57 = scmp.ne.s32.totalorder %s52, %s54
      %p58 = scmp.eq.s32.totalorder %s18, 0
      %p59 = por %p57, %p58
      %p60 = scmp.ne.s32.totalorder %s52, %s54
      %p61 = scmp.eq.s32.totalorder %s23, 1
      %p62 = por %p60, %p61
      %p63 = scmp.ne.s32.totalorder %s54, %s55
      %p64 = scmp.eq.s32.totalorder %s23, 0
      %p65 = por %p63, %p64
      %p66 = scmp.ne.s32.totalorder %s54, %s55
      %p67 = scmp.eq.s32.totalorder %s24, 1
      %p68 = por %p66, %p67
      %p70 = scmp.ne.s32.totalorder %s55, %s69
      %p71 = scmp.eq.s32.totalorder %s24, 0
      %p72 = por %p70, %p71
      %s74 = sadd.s32 %s73, 1
      %p77 = scmp.eq.s32.totalorder %s18, 1
      %p78 = scmp.ne.s32.totalorder %s73, %s75
      %p79 = scmp.eq.s32.totalorder %s18, 0
      %p80 = por %p78, %p79
      %p81 = scmp.ne.s32.totalorder %s73, %s75
      %p82 = scmp.eq.s32.totalorder %s23, 1
      %p83 = por %p81, %p82
      %p84 = scmp.ne.s32.totalorder %s75, %s76
      %p85 = scmp.eq.s32.totalorder %s23, 0
      %p86 = por %p84, %p85
      %p87 = scmp.ne.s32.totalorder %s75, %s76
      %p88 = scmp.eq.s32.totalorder %s24, 1
      %p89 = por %p87, %p88
      %p91 = scmp.ne.s32.totalorder %s76, %s90
      %p92 = scmp.eq.s32.totalorder %s24, 0
      %p93 = por %p91, %p92
      %s95 = sadd.s32 %s94, 1
      %p98 = scmp.eq.s32.totalorder %s18, 1
      %p99 = scmp.ne.s32.totalorder %s94, %s96
      %p100 = scmp.eq.s32.totalorder %s18, 0
      %p101 = por %p99, %p100
      %p102 = scmp.ne.s32.totalorder %s94, %s96
      %p103 = scmp.eq.s32.totalorder %s23, 1
      %p104 = por %p102, %p103
      %p105 = scmp.ne.s32.totalorder %s96, %s97
      %p106 = scmp.eq.s32.totalorder %s23, 0
      %p107 = por %p105, %p106
      %p108 = scmp.ne.s32.totalorder %s96, %s97
      %p109 = scmp.eq.s32.totalorder %s24, 1
      %p110 = por %p108, %p109
      %p112 = scmp.ne.s32.totalorder %s97, %s111
      %p113 = scmp.eq.s32.totalorder %s24, 0
      %p114 = por %p112, %p113
      %s116 = sadd.s32 %s115, 1
      %p119 = scmp.eq.s32.totalorder %s18, 1
      %p120 = scmp.ne.s32.totalorder %s115, %s117
      %p121 = scmp.eq.s32.totalorder %s18, 0
      %p122 = por %p120, %p121
      %p123 = scmp.ne.s32.totalorder %s115, %s117
      %p124 = scmp.eq.s32.totalorder %s23, 1
      %p125 = por %p123, %p124
      %p126 = scmp.ne.s32.totalorder %s117, %s118
      %p127 = scmp.eq.s32.totalorder %s23, 0
      %p128 = por %p126, %p127
      %p129 = scmp.ne.s32.totalorder %s117, %s118
      %p130 = scmp.eq.s32.totalorder %s24, 1
      %p131 = por %p129, %p130
      %p133 = scmp.ne.s32.totalorder %s118, %s132
      %p134 = scmp.eq.s32.totalorder %s24, 0
      %p135 = por %p133, %p134
      %s136 = ssub.s32 %s18, %s25
      %p137 = scmp.eq.s32.totalorder %s136, 0
      %s139 = sadd.s32 %s138, 1
      %s140 = scalar_select %p137, %s138, %s139
      %p143 = pneg %p137
      %p144 = scmp.eq.s32.totalorder %s18, 1
      %p145 = por %p143, %p144
      %p146 = scmp.ne.s32.totalorder %s138, %s141
      %p147 = scmp.eq.s32.totalorder %s18, 0
      %p148 = por %p146, %p147
      %p149 = scmp.ne.s32.totalorder %s138, %s141
      %p150 = scmp.eq.s32.totalorder %s23, 1
      %p151 = por %p149, %p150
      %p152 = scmp.ne.s32.totalorder %s141, %s142
      %p153 = scmp.eq.s32.totalorder %s23, 0
      %p154 = por %p152, %p153
      %p155 = scmp.ne.s32.totalorder %s141, %s142
      %p156 = scmp.eq.s32.totalorder %s24, 1
      %p157 = por %p155, %p156
      %p159 = scmp.ne.s32.totalorder %s142, %s158
      %p160 = scmp.eq.s32.totalorder %s24, 0
      %p161 = por %p159, %p160
      %p162 = scmp.le.s32.totalorder 1, %s18
      %p163 = scmp.lt.s32.totalorder %s18, 3
      %p164 = pnand %p162, %p163
      %p165 = pneg %p164
      // Predicated region
      $region9: #{tpu_custom_call.1} parent=5 // pred_check
        _
      $region10: #{tpu_custom_call.1} parent=5 // pred_check_branch
        %167 = sbr.rel (%p164) target = $region12
      $region11: #{tpu_custom_call.1} parent=5 // pred_region
        %s168 = ssub.s32 %s18, 1
        // Predicated region
        $region13: #{tpu_custom_call.1} parent=11 // pred_check
          %p169 = pneg %p65
        $region14: #{tpu_custom_call.1} parent=11 // pred_check_branch
          %171 = sbr.rel (%p169) target = $region16
        $region15: #{tpu_custom_call.1} parent=11 // pred_region
          %s173 = ssub.s32 256, 256
          %174 = vsyncadd [#allocation6], %s173
          %s175 = sshll.u32 [#allocation5], 4
          %s176 = int_to_ptr.vmem [resolvable:$true] %s175
          %181 = dma.hbm_to_vmem [thread:$0]  %s1, 256, %s176, [#allocation6], 64, 64, 4
        $region16: #{tpu_custom_call.1} parent=11 // pred_fallthru
          _
        // Predicated region
        $region17: #{tpu_custom_call.1} parent=11 // pred_check
          %p182 = pneg %p86
        $region18: #{tpu_custom_call.1} parent=11 // pred_check_branch
          %184 = sbr.rel (%p182) target = $region20
        $region19: #{tpu_custom_call.1} parent=11 // pred_region
          _
        $region20: #{tpu_custom_call.1} parent=11 // pred_fallthru
          _
        // Predicated region
        $region21: #{tpu_custom_call.1} parent=11 // pred_check
          %p185 = pneg %p107
        $region22: #{tpu_custom_call.1} parent=11 // pred_check_branch
          %187 = sbr.rel (%p185) target = $region24
        $region23: #{tpu_custom_call.1} parent=11 // pred_region
          %s189 = ssub.s32 256, 256
          %190 = vsyncadd [#allocation6], %s189
          %s191 = sshll.u32 [#allocation7], 4
          %s192 = int_to_ptr.vmem [resolvable:$true] %s191
          %197 = dma.hbm_to_vmem [thread:$0]  %s3, 256, %s192, [#allocation6], 64, 64, 4
        $region24: #{tpu_custom_call.1} parent=11 // pred_fallthru
          _
        // Predicated region
        $region25: #{tpu_custom_call.1} parent=11 // pred_check
          %p198 = pneg %p128
        $region26: #{tpu_custom_call.1} parent=11 // pred_check_branch
          %200 = sbr.rel (%p198) target = $region28
        $region27: #{tpu_custom_call.1} parent=11 // pred_region
          _
        $region28: #{tpu_custom_call.1} parent=11 // pred_fallthru
          _
      $region12: #{tpu_custom_call.1} parent=5 // pred_fallthru
        _
      %p201 = scmp.lt.s32.totalorder %s18, 2
      // Predicated region
      $region29: #{tpu_custom_call.1} parent=5 // pred_check
        %p202 = pneg %p201
      $region30: #{tpu_custom_call.1} parent=5 // pred_check_branch
        %204 = sbr.rel (%p202) target = $region32
      $region31: #{tpu_custom_call.1} parent=5 // pred_region
        // Predicated region
        $region33: #{tpu_custom_call.1} parent=31 // pred_check
          %p205 = pneg %p38
        $region34: #{tpu_custom_call.1} parent=31 // pred_check_branch
          %207 = sbr.rel (%p205) target = $region36
        $region35: #{tpu_custom_call.1} parent=31 // pred_region
          %s208 = sand.u32 %s28, 1
          %s209 = scalar_lea.sflag [#allocation3], %s208
          %s210 = sand.u32 %s28, 1
          %s211 = smul.addr %s210, 4
          %s212 = scalar_lea.vmem [#allocation2], %s211
          %s214 = ssub.s32 64, 64
          %215 = vsyncadd %s209, %s214
          %s216 = smul.addr %s18, 64
          %s217 = scalar_lea.hbm %s0, %s216
          %s219 = sshll.u32 %s212, 4
          %s220 = int_to_ptr.vmem [resolvable:$true] %s219
          %222 = dma.hbm_to_vmem [thread:$0]  %s217, 64, %s220, %s209
        $region36: #{tpu_custom_call.1} parent=31 // pred_fallthru
          _
      $region32: #{tpu_custom_call.1} parent=5 // pred_fallthru
        _
      %p223 = scmp.le.s32.totalorder 1, %s18
      %p224 = scmp.lt.s32.totalorder %s18, 3
      %p225 = pnand %p223, %p224
      %p226 = pneg %p225
      // Predicated region
      $region37: #{tpu_custom_call.1} parent=5 // pred_check
        _
      $region38: #{tpu_custom_call.1} parent=5 // pred_check_branch
        %228 = sbr.rel (%p225) target = $region40
      $region39: #{tpu_custom_call.1} parent=5 // pred_region
        %s229 = ssub.s32 %s18, 1
        %s230 = sand.u32 %s31, 1
        %s231 = scalar_lea.sflag [#allocation3], %s230
        %s232 = sand.u32 %s31, 1
        %s233 = smul.addr %s232, 4
        %s234 = scalar_lea.vmem [#allocation2], %s233
        // Predicated region
        $region41: #{tpu_custom_call.1} parent=39 // pred_check
          %p235 = pneg %p44
        $region42: #{tpu_custom_call.1} parent=39 // pred_check_branch
          %237 = sbr.rel (%p235) target = $region44
        $region43: #{tpu_custom_call.1} parent=39 // pred_region
          %238 = dma.done %s231, 64
        $region44: #{tpu_custom_call.1} parent=39 // pred_fallthru
          _
        // Predicated region
        $region45: #{tpu_custom_call.1} parent=39 // pred_check
          %p239 = pneg %p65
        $region46: #{tpu_custom_call.1} parent=39 // pred_check_branch
          %241 = sbr.rel (%p239) target = $region48
        $region47: #{tpu_custom_call.1} parent=39 // pred_region
          %242 = dma.done [#allocation6], 256
        $region48: #{tpu_custom_call.1} parent=39 // pred_fallthru
          _
        // Predicated region
        $region49: #{tpu_custom_call.1} parent=39 // pred_check
          %p243 = pneg %p107
        $region50: #{tpu_custom_call.1} parent=39 // pred_check_branch
          %245 = sbr.rel (%p243) target = $region52
        $region51: #{tpu_custom_call.1} parent=39 // pred_region
          %246 = dma.done [#allocation6], 256
        $region52: #{tpu_custom_call.1} parent=39 // pred_fallthru
          _
        %s247 = sand.u32 %s31, 1
        %s248 = scalar_lea.sflag [#allocation3], %s247
        %s249 = sand.u32 %s31, 1
        %s250 = smul.addr %s249, 4
        %s251 = scalar_lea.vmem [#allocation2], %s250
        %p252 = pneg %p44
        %p253 = pneg %p41
        %p254 = pneg %p65
        %p255 = pneg %p62
        %p256 = pneg %p86
        %p257 = pneg %p83
        %p258 = pneg %p107
        %p259 = pneg %p104
        %p260 = pneg %p128
        %p261 = pneg %p125
        %p262 = pneg %p154
        %p263 = pneg %p151
        %s264 = sand.u32 %s141, 1
        %s265 = scalar_lea.sflag [#allocation4], %s264
        %s266 = sand.u32 %s141, 1
        %s267 = smul.addr %s266, 8
        %s268 = scalar_lea.vmem [#allocation8], %s267
        %v270 = vld [vmem:[%s234] sm:$0xf]
        %v271 = vld [vmem:[#allocation5] sm:$0xf]
        %v272 = vld [vmem:[#allocation5 + $0x4] sm:$0xf]
        %v273 = vld [vmem:[#allocation5 + $0x8] sm:$0xf]
        %v274 = vld [vmem:[#allocation5 + $0xc] sm:$0xf]
        %v275 = vld [vmem:[%s2] sm:$0x1]
        %v277 = vlaneseq
        %v278 = vshrl.u32 %v277, 7
        %v279 = vsub.s32 0, %v278
        %v280 = vrot.slane %v275, %v279
        %v286 = vunpack.c.l.b16 %v271
        %v287 = vunpack.c.l.b16 %v272
        %v288 = vunpack.c.l.b16 %v273
        %v289 = vunpack.c.l.b16 %v274
        %v290 = vpack.c.b16 %v287, %v286
        %v291 = vpack.c.b16 %v289, %v288
        %vm294 = vcmask 261120
        %v296 = vsel %vm294, %v270, 0
        %298 = vmatprep.subr.bf16.mxu0 0
        %299 = vmatpush1.bf16.msra.mxu0 %v290
        %300 = vmatprep.subr.bf16.mxu0 0
        %301 = vmatpush1.bf16.msra.mxu0 %v291
        %302 = vmatprep.subr.bf16.mxu0 0
        %303 = vmatpush1.bf16.msra.mxu0 0
        %304 = vmatprep.subr.bf16.mxu0 0
        %305 = vmatpush1.bf16.msra.mxu0 0
        %306 = vmatprep.subr.bf16.mxu0 0
        %307 = vmatpush1.bf16.msra.mxu0 0
        %308 = vmatprep.subr.bf16.mxu0 0
        %309 = vmatpush1.bf16.msra.mxu0 0
        %310 = vmatprep.subr.bf16.mxu0 0
        %311 = vmatpush1.bf16.msra.mxu0 0
        %312 = vmatprep.subr.bf16.mxu0 0
        %313 = vmatpush1.bf16.msra.mxu0 0
        %314 = vmatprep.subr.bf16.mxu0 0
        %315 = vmatpush1.bf16.msra.mxu0 0
        %316 = vmatprep.subr.bf16.mxu0 0
        %317 = vmatpush1.bf16.msra.mxu0 0
        %318 = vmatprep.subr.bf16.mxu0 0
        %319 = vmatpush1.bf16.msra.mxu0 0
        %320 = vmatprep.subr.bf16.mxu0 0
        %321 = vmatpush1.bf16.msra.mxu0 0
        %322 = vmatprep.subr.bf16.mxu0 0
        %323 = vmatpush1.bf16.msra.mxu0 0
        %324 = vmatprep.subr.bf16.mxu0 0
        %325 = vmatpush1.bf16.msra.mxu0 0
        %326 = vmatprep.subr.bf16.mxu0 0
        %327 = vmatpush1.bf16.msra.mxu0 0
        %328 = vmatprep.subr.bf16.mxu0 0
        %329 = vmatpush1.bf16.msra.mxu0 0
        %330 = vmatprep.mubr.bf16.mxu0 0
        %331 = vmatmul.mubr.bf16.gmra.mrb[0].mxu0 %v296
        %v332 = vpop.f32.mrb[0].mxu0
        %v333 = vadd.f32 %v280, %v332
        %v334 = vpop.f32.mrb[0].mxu0
        %v335 = vpop.f32.mrb[0].mxu0
        %v336 = vpop.f32.mrb[0].mxu0
        %337 = vdwg.mxu0
        %339 = vrot.lane.b32.xlu0 %v333, 120
        %v340 = vpop.permute.xlu0 %339
        %342 = vrot.lane.b32.xlu0 %v333, 112
        %v343 = vpop.permute.xlu0 %342
        %345 = vrot.lane.b32.xlu0 %v333, 104
        %v346 = vpop.permute.xlu0 %345
        %v348 = vmul.f32 %v333, 0.35355338
        %v349 = vmul.f32 %v340, 0.35355338
        %v350 = vmul.f32 %v343, 0.35355338
        %v351 = vmul.f32 %v346, 0.35355338
        %v352 = vpack.c.bf16 %v348, %v348
        %v353 = vpack.c.bf16 %v349, %v349
        %v354 = vpack.c.bf16 %v350, %v350
        %v355 = vpack.c.bf16 %v351, %v351
        %v356 = vpack.c.bf16 %v333, %v333
        %v357 = vpack.c.bf16 %v340, %v340
        %v358 = vpack.c.bf16 %v343, %v343
        %v359 = vpack.c.bf16 %v346, %v346
        %361 = vrot.lane.b32.xlu0 %v356, 96
        %v362 = vpop.permute.xlu0 %361
        %vm363 = vcmask 64512
        %v365 = vsel %vm363, %v352, 0
        %v368 = vsel %vm363, %v362, 0
        %370 = vmatprep.subr.bf16.mxu0 0
        %371 = vmatpush1.bf16.xpose.msra.mxu0 %v368
        %372 = vmatprep.subr.bf16.mxu0 0
        %373 = vmatpush1.bf16.xpose.msra.mxu0 0
        %374 = vmatprep.subr.bf16.mxu0 0
        %375 = vmatpush1.bf16.xpose.msra.mxu0 0
        %376 = vmatprep.subr.bf16.mxu0 0
        %377 = vmatpush1.bf16.xpose.msra.mxu0 0
        %378 = vmatprep.subr.bf16.mxu0 0
        %379 = vmatpush1.bf16.xpose.msra.mxu0 0
        %380 = vmatprep.subr.bf16.mxu0 0
        %381 = vmatpush1.bf16.xpose.msra.mxu0 0
        %382 = vmatprep.subr.bf16.mxu0 0
        %383 = vmatpush1.bf16.xpose.msra.mxu0 0
        %384 = vmatprep.subr.bf16.mxu0 0
        %385 = vmatpush1.bf16.xpose.msra.mxu0 0
        %386 = vmatprep.subr.bf16.mxu0 0
        %387 = vmatpush1.bf16.xpose.msra.mxu0 0
        %388 = vmatprep.subr.bf16.mxu0 0
        %389 = vmatpush1.bf16.xpose.msra.mxu0 0
        %390 = vmatprep.subr.bf16.mxu0 0
        %391 = vmatpush1.bf16.xpose.msra.mxu0 0
        %392 = vmatprep.subr.bf16.mxu0 0
        %393 = vmatpush1.bf16.xpose.msra.mxu0 0
        %394 = vmatprep.subr.bf16.mxu0 0
        %395 = vmatpush1.bf16.xpose.msra.mxu0 0
        %396 = vmatprep.subr.bf16.mxu0 0
        %397 = vmatpush1.bf16.xpose.msra.mxu0 0
        %398 = vmatprep.subr.bf16.mxu0 0
        %399 = vmatpush1.bf16.xpose.msra.mxu0 0
        %400 = vmatprep.subr.bf16.mxu0 0
        %401 = vmatpush1.bf16.xpose.msra.mxu0 0
        %402 = vmatprep.mubr.bf16.mxu0 0
        %403 = vmatmul.mubr.bf16.gmra.mrb[0].mxu0 %v365
        %v404 = vpop.f32.mrb[0].mxu0
        %v405 = vadd.f32 0.0, %v404
        %v406 = vpop.f32.mrb[0].mxu0
        %v407 = vpop.f32.mrb[0].mxu0
        %v408 = vpop.f32.mrb[0].mxu0
        %409 = vdwg.mxu0
        %411 = vrot.lane.b32.xlu0 %v357, 96
        %v412 = vpop.permute.xlu0 %411
        %v414 = vsel %vm363, %v353, 0
        %v417 = vsel %vm363, %v412, 0
        %419 = vmatprep.subr.bf16.mxu0 0
        %420 = vmatpush1.bf16.xpose.msra.mxu0 %v417
        %421 = vmatprep.subr.bf16.mxu0 0
        %422 = vmatpush1.bf16.xpose.msra.mxu0 0
        %423 = vmatprep.subr.bf16.mxu0 0
        %424 = vmatpush1.bf16.xpose.msra.mxu0 0
        %425 = vmatprep.subr.bf16.mxu0 0
        %426 = vmatpush1.bf16.xpose.msra.mxu0 0
        %427 = vmatprep.subr.bf16.mxu0 0
        %428 = vmatpush1.bf16.xpose.msra.mxu0 0
        %429 = vmatprep.subr.bf16.mxu0 0
        %430 = vmatpush1.bf16.xpose.msra.mxu0 0
        %431 = vmatprep.subr.bf16.mxu0 0
        %432 = vmatpush1.bf16.xpose.msra.mxu0 0
        %433 = vmatprep.subr.bf16.mxu0 0
        %434 = vmatpush1.bf16.xpose.msra.mxu0 0
        %435 = vmatprep.subr.bf16.mxu0 0
        %436 = vmatpush1.bf16.xpose.msra.mxu0 0
        %437 = vmatprep.subr.bf16.mxu0 0
        %438 = vmatpush1.bf16.xpose.msra.mxu0 0
        %439 = vmatprep.subr.bf16.mxu0 0
        %440 = vmatpush1.bf16.xpose.msra.mxu0 0
        %441 = vmatprep.subr.bf16.mxu0 0
        %442 = vmatpush1.bf16.xpose.msra.mxu0 0
        %443 = vmatprep.subr.bf16.mxu0 0
        %444 = vmatpush1.bf16.xpose.msra.mxu0 0
        %445 = vmatprep.subr.bf16.mxu0 0
        %446 = vmatpush1.bf16.xpose.msra.mxu0 0
        %447 = vmatprep.subr.bf16.mxu0 0
        %448 = vmatpush1.bf16.xpose.msra.mxu0 0
        %449 = vmatprep.subr.bf16.mxu0 0
        %450 = vmatpush1.bf16.xpose.msra.mxu0 0
        %451 = vmatprep.mubr.bf16.mxu0 0
        %452 = vmatmul.mubr.bf16.gmra.mrb[0].mxu0 %v414
        %v453 = vpop.f32.mrb[0].mxu0
        %v454 = vadd.f32 0.0, %v453
        %v455 = vpop.f32.mrb[0].mxu0
        %v456 = vpop.f32.mrb[0].mxu0
        %v457 = vpop.f32.mrb[0].mxu0
        %458 = vdwg.mxu0
        %460 = vrot.lane.b32.xlu0 %v358, 96
        %v461 = vpop.permute.xlu0 %460
        %v463 = vsel %vm363, %v354, 0
        %v466 = vsel %vm363, %v461, 0
        %468 = vmatprep.subr.bf16.mxu0 0
        %469 = vmatpush1.bf16.xpose.msra.mxu0 %v466
        %470 = vmatprep.subr.bf16.mxu0 0
        %471 = vmatpush1.bf16.xpose.msra.mxu0 0
        %472 = vmatprep.subr.bf16.mxu0 0
        %473 = vmatpush1.bf16.xpose.msra.mxu0 0
        %474 = vmatprep.subr.bf16.mxu0 0
        %475 = vmatpush1.bf16.xpose.msra.mxu0 0
        %476 = vmatprep.subr.bf16.mxu0 0
        %477 = vmatpush1.bf16.xpose.msra.mxu0 0
        %478 = vmatprep.subr.bf16.mxu0 0
        %479 = vmatpush1.bf16.xpose.msra.mxu0 0
        %480 = vmatprep.subr.bf16.mxu0 0
        %481 = vmatpush1.bf16.xpose.msra.mxu0 0
        %482 = vmatprep.subr.bf16.mxu0 0
        %483 = vmatpush1.bf16.xpose.msra.mxu0 0
        %484 = vmatprep.subr.bf16.mxu0 0
        %485 = vmatpush1.bf16.xpose.msra.mxu0 0
        %486 = vmatprep.subr.bf16.mxu0 0
        %487 = vmatpush1.bf16.xpose.msra.mxu0 0
        %488 = vmatprep.subr.bf16.mxu0 0
        %489 = vmatpush1.bf16.xpose.msra.mxu0 0
        %490 = vmatprep.subr.bf16.mxu0 0
        %491 = vmatpush1.bf16.xpose.msra.mxu0 0
        %492 = vmatprep.subr.bf16.mxu0 0
        %493 = vmatpush1.bf16.xpose.msra.mxu0 0
        %494 = vmatprep.subr.bf16.mxu0 0
        %495 = vmatpush1.bf16.xpose.msra.mxu0 0
        %496 = vmatprep.subr.bf16.mxu0 0
        %497 = vmatpush1.bf16.xpose.msra.mxu0 0
        %498 = vmatprep.subr.bf16.mxu0 0
        %499 = vmatpush1.bf16.xpose.msra.mxu0 0
        %500 = vmatprep.mubr.bf16.mxu0 0
        %501 = vmatmul.mubr.bf16.gmra.mrb[0].mxu0 %v463
        %v502 = vpop.f32.mrb[0].mxu0
        %v503 = vadd.f32 0.0, %v502
        %v504 = vpop.f32.mrb[0].mxu0
        %v505 = vpop.f32.mrb[0].mxu0
        %v506 = vpop.f32.mrb[0].mxu0
        %507 = vdwg.mxu0
        %509 = vrot.lane.b32.xlu0 %v359, 96
        %v510 = vpop.permute.xlu0 %509
        %v512 = vsel %vm363, %v355, 0
        %v515 = vsel %vm363, %v510, 0
        %517 = vmatprep.subr.bf16.mxu0 0
        %518 = vmatpush1.bf16.xpose.msra.mxu0 %v515
        %519 = vmatprep.subr.bf16.mxu0 0
        %520 = vmatpush1.bf16.xpose.msra.mxu0 0
        %521 = vmatprep.subr.bf16.mxu0 0
        %522 = vmatpush1.bf16.xpose.msra.mxu0 0
        %523 = vmatprep.subr.bf16.mxu0 0
        %524 = vmatpush1.bf16.xpose.msra.mxu0 0
        %525 = vmatprep.subr.bf16.mxu0 0
        %526 = vmatpush1.bf16.xpose.msra.mxu0 0
        %527 = vmatprep.subr.bf16.mxu0 0
        %528 = vmatpush1.bf16.xpose.msra.mxu0 0
        %529 = vmatprep.subr.bf16.mxu0 0
        %530 = vmatpush1.bf16.xpose.msra.mxu0 0
        %531 = vmatprep.subr.bf16.mxu0 0
        %532 = vmatpush1.bf16.xpose.msra.mxu0 0
        %533 = vmatprep.subr.bf16.mxu0 0
        %534 = vmatpush1.bf16.xpose.msra.mxu0 0
        %535 = vmatprep.subr.bf16.mxu0 0
        %536 = vmatpush1.bf16.xpose.msra.mxu0 0
        %537 = vmatprep.subr.bf16.mxu0 0
        %538 = vmatpush1.bf16.xpose.msra.mxu0 0
        %539 = vmatprep.subr.bf16.mxu0 0
        %540 = vmatpush1.bf16.xpose.msra.mxu0 0
        %541 = vmatprep.subr.bf16.mxu0 0
        %542 = vmatpush1.bf16.xpose.msra.mxu0 0
        %543 = vmatprep.subr.bf16.mxu0 0
        %544 = vmatpush1.bf16.xpose.msra.mxu0 0
        %545 = vmatprep.subr.bf16.mxu0 0
        %546 = vmatpush1.bf16.xpose.msra.mxu0 0
        %547 = vmatprep.subr.bf16.mxu0 0
        %548 = vmatpush1.bf16.xpose.msra.mxu0 0
        %549 = vmatprep.mubr.bf16.mxu0 0
        %550 = vmatmul.mubr.bf16.gmra.mrb[0].mxu0 %v512
        %v551 = vpop.f32.mrb[0].mxu0
        %v552 = vadd.f32 0.0, %v551
        %v553 = vpop.f32.mrb[0].mxu0
        %v554 = vpop.f32.mrb[0].mxu0
        %v555 = vpop.f32.mrb[0].mxu0
        %556 = vdwg.mxu0
        %v557 = vlaneseq
        %v558 = vshrl.u32 %v557, 7
        %v559 = vlaneseq
        %v560 = vand.u32 %v559, 127
        %vm561 = vcmp.ge.s32.totalorder %v558, %v560
        %v562 = vsel %vm561, 1, 0
        %vm563 = vcmp.eq.s32.totalorder %v562, 1
        %v564 = vsel %vm563, %v405, -1e+30
        %v565 = vsel %vm563, %v454, -1e+30
        %v566 = vsel %vm563, %v503, -1e+30
        %v567 = vsel %vm563, %v552, -1e+30
        %v568 = vsel %vm363, %v564, -inf
        %569 = vmax.xlane.f32.xlu0 %v568
        %v570 = vpop.xlane.xlu0 %569
        %v571 = vsel %vm363, %v565, -inf
        %572 = vmax.xlane.f32.xlu0 %v571
        %v573 = vpop.xlane.xlu0 %572
        %v574 = vsel %vm363, %v566, -inf
        %575 = vmax.xlane.f32.xlu0 %v574
        %v576 = vpop.xlane.xlu0 %575
        %v577 = vsel %vm363, %v567, -inf
        %578 = vmax.xlane.f32.xlu0 %v577
        %v579 = vpop.xlane.xlu0 %578
        %v580 = vsub.f32 %v564, %v570
        %v581 = vsub.f32 %v565, %v573
        %v582 = vsub.f32 %v566, %v576
        %v583 = vsub.f32 %v567, %v579
        %v584 = vmul.f32 %v580, 1.442695
        %v585 = vpow.pop %v584
        %v586 = vmul.f32 %v581, 1.442695
        %v587 = vpow.pop %v586
        %v588 = vmul.f32 %v582, 1.442695
        %v589 = vpow.pop %v588
        %v590 = vmul.f32 %v583, 1.442695
        %v591 = vpow.pop %v590
        %v592 = vsel %vm363, %v585, 0.0
        %593 = vadd.xlane.f32.xlu0 %v592
        %v594 = vpop.xlane.xlu0 %593
        %v595 = vsel %vm363, %v587, 0.0
        %596 = vadd.xlane.f32.xlu0 %v595
        %v597 = vpop.xlane.xlu0 %596
        %v598 = vsel %vm363, %v589, 0.0
        %599 = vadd.xlane.f32.xlu0 %v598
        %v600 = vpop.xlane.xlu0 %599
        %v601 = vsel %vm363, %v591, 0.0
        %602 = vadd.xlane.f32.xlu0 %v601
        %v603 = vpop.xlane.xlu0 %602
        %v604 = vpack.c.bf16 %v585, %v585
        %v605 = vpack.c.bf16 %v587, %v587
        %v606 = vpack.c.bf16 %v589, %v589
        %v607 = vpack.c.bf16 %v591, %v591
        %608 = vrot.lane.b32.xlu0 %v356, 64
        %v609 = vpop.permute.xlu0 %608
        %v611 = vsel %vm363, %v604, 0
        %vm613 = vcmask 1043456
        %v615 = vsel %vm613, %v609, 0
        %617 = vmatprep.subr.bf16.mxu0 0
        %618 = vmatpush1.bf16.msra.mxu0 %v615
        %619 = vmatprep.subr.bf16.mxu0 0
        %620 = vmatpush1.bf16.msra.mxu0 0
        %621 = vmatprep.subr.bf16.mxu0 0
        %622 = vmatpush1.bf16.msra.mxu0 0
        %623 = vmatprep.subr.bf16.mxu0 0
        %624 = vmatpush1.bf16.msra.mxu0 0
        %625 = vmatprep.subr.bf16.mxu0 0
        %626 = vmatpush1.bf16.msra.mxu0 0
        %627 = vmatprep.subr.bf16.mxu0 0
        %628 = vmatpush1.bf16.msra.mxu0 0
        %629 = vmatprep.subr.bf16.mxu0 0
        %630 = vmatpush1.bf16.msra.mxu0 0
        %631 = vmatprep.subr.bf16.mxu0 0
        %632 = vmatpush1.bf16.msra.mxu0 0
        %633 = vmatprep.subr.bf16.mxu0 0
        %634 = vmatpush1.bf16.msra.mxu0 0
        %635 = vmatprep.subr.bf16.mxu0 0
        %636 = vmatpush1.bf16.msra.mxu0 0
        %637 = vmatprep.subr.bf16.mxu0 0
        %638 = vmatpush1.bf16.msra.mxu0 0
        %639 = vmatprep.subr.bf16.mxu0 0
        %640 = vmatpush1.bf16.msra.mxu0 0
        %641 = vmatprep.subr.bf16.mxu0 0
        %642 = vmatpush1.bf16.msra.mxu0 0
        %643 = vmatprep.subr.bf16.mxu0 0
        %644 = vmatpush1.bf16.msra.mxu0 0
        %645 = vmatprep.subr.bf16.mxu0 0
        %646 = vmatpush1.bf16.msra.mxu0 0
        %647 = vmatprep.subr.bf16.mxu0 0
        %648 = vmatpush1.bf16.msra.mxu0 0
        %649 = vmatprep.mubr.bf16.mxu0 0
        %650 = vmatmul.mubr.bf16.gmra.mrb[0].mxu0 %v611
        %v651 = vpop.f32.mrb[0].mxu0
        %v652 = vadd.f32 0.0, %v651
        %v653 = vpop.f32.mrb[0].mxu0
        %v654 = vpop.f32.mrb[0].mxu0
        %v655 = vpop.f32.mrb[0].mxu0
        %656 = vdwg.mxu0
        %657 = vrot.lane.b32.xlu0 %v357, 64
        %v658 = vpop.permute.xlu0 %657
        %v660 = vsel %vm363, %v605, 0
        %v663 = vsel %vm613, %v658, 0
        %665 = vmatprep.subr.bf16.mxu0 0
        %666 = vmatpush1.bf16.msra.mxu0 %v663
        %667 = vmatprep.subr.bf16.mxu0 0
        %668 = vmatpush1.bf16.msra.mxu0 0
        %669 = vmatprep.subr.bf16.mxu0 0
        %670 = vmatpush1.bf16.msra.mxu0 0
        %671 = vmatprep.subr.bf16.mxu0 0
        %672 = vmatpush1.bf16.msra.mxu0 0
        %673 = vmatprep.subr.bf16.mxu0 0
        %674 = vmatpush1.bf16.msra.mxu0 0
        %675 = vmatprep.subr.bf16.mxu0 0
        %676 = vmatpush1.bf16.msra.mxu0 0
        %677 = vmatprep.subr.bf16.mxu0 0
        %678 = vmatpush1.bf16.msra.mxu0 0
        %679 = vmatprep.subr.bf16.mxu0 0
        %680 = vmatpush1.bf16.msra.mxu0 0
        %681 = vmatprep.subr.bf16.mxu0 0
        %682 = vmatpush1.bf16.msra.mxu0 0
        %683 = vmatprep.subr.bf16.mxu0 0
        %684 = vmatpush1.bf16.msra.mxu0 0
        %685 = vmatprep.subr.bf16.mxu0 0
        %686 = vmatpush1.bf16.msra.mxu0 0
        %687 = vmatprep.subr.bf16.mxu0 0
        %688 = vmatpush1.bf16.msra.mxu0 0
        %689 = vmatprep.subr.bf16.mxu0 0
        %690 = vmatpush1.bf16.msra.mxu0 0
        %691 = vmatprep.subr.bf16.mxu0 0
        %692 = vmatpush1.bf16.msra.mxu0 0
        %693 = vmatprep.subr.bf16.mxu0 0
        %694 = vmatpush1.bf16.msra.mxu0 0
        %695 = vmatprep.subr.bf16.mxu0 0
        %696 = vmatpush1.bf16.msra.mxu0 0
        %697 = vmatprep.mubr.bf16.mxu0 0
        %698 = vmatmul.mubr.bf16.gmra.mrb[0].mxu0 %v660
        %v699 = vpop.f32.mrb[0].mxu0
        %v700 = vadd.f32 0.0, %v699
        %v701 = vpop.f32.mrb[0].mxu0
        %v702 = vpop.f32.mrb[0].mxu0
        %v703 = vpop.f32.mrb[0].mxu0
        %704 = vdwg.mxu0
        %705 = vrot.lane.b32.xlu0 %v358, 64
        %v706 = vpop.permute.xlu0 %705
        %v708 = vsel %vm363, %v606, 0
        %v711 = vsel %vm613, %v706, 0
        %713 = vmatprep.subr.bf16.mxu0 0
        %714 = vmatpush1.bf16.msra.mxu0 %v711
        %715 = vmatprep.subr.bf16.mxu0 0
        %716 = vmatpush1.bf16.msra.mxu0 0
        %717 = vmatprep.subr.bf16.mxu0 0
        %718 = vmatpush1.bf16.msra.mxu0 0
        %719 = vmatprep.subr.bf16.mxu0 0
        %720 = vmatpush1.bf16.msra.mxu0 0
        %721 = vmatprep.subr.bf16.mxu0 0
        %722 = vmatpush1.bf16.msra.mxu0 0
        %723 = vmatprep.subr.bf16.mxu0 0
        %724 = vmatpush1.bf16.msra.mxu0 0
        %725 = vmatprep.subr.bf16.mxu0 0
        %726 = vmatpush1.bf16.msra.mxu0 0
        %727 = vmatprep.subr.bf16.mxu0 0
        %728 = vmatpush1.bf16.msra.mxu0 0
        %729 = vmatprep.subr.bf16.mxu0 0
        %730 = vmatpush1.bf16.msra.mxu0 0
        %731 = vmatprep.subr.bf16.mxu0 0
        %732 = vmatpush1.bf16.msra.mxu0 0
        %733 = vmatprep.subr.bf16.mxu0 0
        %734 = vmatpush1.bf16.msra.mxu0 0
        %735 = vmatprep.subr.bf16.mxu0 0
        %736 = vmatpush1.bf16.msra.mxu0 0
        %737 = vmatprep.subr.bf16.mxu0 0
        %738 = vmatpush1.bf16.msra.mxu0 0
        %739 = vmatprep.subr.bf16.mxu0 0
        %740 = vmatpush1.bf16.msra.mxu0 0
        %741 = vmatprep.subr.bf16.mxu0 0
        %742 = vmatpush1.bf16.msra.mxu0 0
        %743 = vmatprep.subr.bf16.mxu0 0
        %744 = vmatpush1.bf16.msra.mxu0 0
        %745 = vmatprep.mubr.bf16.mxu0 0
        %746 = vmatmul.mubr.bf16.gmra.mrb[0].mxu0 %v708
        %v747 = vpop.f32.mrb[0].mxu0
        %v748 = vadd.f32 0.0, %v747
        %v749 = vpop.f32.mrb[0].mxu0
        %v750 = vpop.f32.mrb[0].mxu0
        %v751 = vpop.f32.mrb[0].mxu0
        %752 = vdwg.mxu0
        %753 = vrot.lane.b32.xlu0 %v359, 64
        %v754 = vpop.permute.xlu0 %753
        %v756 = vsel %vm363, %v607, 0
        %v759 = vsel %vm613, %v754, 0
        %761 = vmatprep.subr.bf16.mxu0 0
        %762 = vmatpush1.bf16.msra.mxu0 %v759
        %763 = vmatprep.subr.bf16.mxu0 0
        %764 = vmatpush1.bf16.msra.mxu0 0
        %765 = vmatprep.subr.bf16.mxu0 0
        %766 = vmatpush1.bf16.msra.mxu0 0
        %767 = vmatprep.subr.bf16.mxu0 0
        %768 = vmatpush1.bf16.msra.mxu0 0
        %769 = vmatprep.subr.bf16.mxu0 0
        %770 = vmatpush1.bf16.msra.mxu0 0
        %771 = vmatprep.subr.bf16.mxu0 0
        %772 = vmatpush1.bf16.msra.mxu0 0
        %773 = vmatprep.subr.bf16.mxu0 0
        %774 = vmatpush1.bf16.msra.mxu0 0
        %775 = vmatprep.subr.bf16.mxu0 0
        %776 = vmatpush1.bf16.msra.mxu0 0
        %777 = vmatprep.subr.bf16.mxu0 0
        %778 = vmatpush1.bf16.msra.mxu0 0
        %779 = vmatprep.subr.bf16.mxu0 0
        %780 = vmatpush1.bf16.msra.mxu0 0
        %781 = vmatprep.subr.bf16.mxu0 0
        %782 = vmatpush1.bf16.msra.mxu0 0
        %783 = vmatprep.subr.bf16.mxu0 0
        %784 = vmatpush1.bf16.msra.mxu0 0
        %785 = vmatprep.subr.bf16.mxu0 0
        %786 = vmatpush1.bf16.msra.mxu0 0
        %787 = vmatprep.subr.bf16.mxu0 0
        %788 = vmatpush1.bf16.msra.mxu0 0
        %789 = vmatprep.subr.bf16.mxu0 0
        %790 = vmatpush1.bf16.msra.mxu0 0
        %791 = vmatprep.subr.bf16.mxu0 0
        %792 = vmatpush1.bf16.msra.mxu0 0
        %793 = vmatprep.mubr.bf16.mxu0 0
        %794 = vmatmul.mubr.bf16.gmra.mrb[0].mxu0 %v756
        %v795 = vpop.f32.mrb[0].mxu0
        %v796 = vadd.f32 0.0, %v795
        %v797 = vpop.f32.mrb[0].mxu0
        %v798 = vpop.f32.mrb[0].mxu0
        %v799 = vpop.f32.mrb[0].mxu0
        %800 = vdwg.mxu0
        %v801 = vrcp.pop %v594
        %v802 = vrcp.pop %v597
        %v803 = vrcp.pop %v600
        %v804 = vrcp.pop %v603
        %v805 = vmul.f32 %v652, %v801
        %v806 = vmul.f32 %v700, %v802
        %v807 = vmul.f32 %v748, %v803
        %v808 = vmul.f32 %v796, %v804
        %810 = vrot.lane.b32.xlu0 %v806, 8
        %v811 = vpop.permute.xlu0 %810
        %814 = vrot.lane.b32.xlu0 %v807, 16
        %v815 = vpop.permute.xlu0 %814
        %818 = vrot.lane.b32.xlu0 %v808, 24
        %v819 = vpop.permute.xlu0 %818
        %v821 = vsel %vm363, %v805, %v811
        %vm822 = vcmask 130048
        %v823 = vsel %vm822, %v821, %v815
        %vm824 = vcmask 195584
        %v825 = vsel %vm824, %v823, %v819
        %v826 = vpack.c.bf16 %v825, %v825
        %v827 = vld [vmem:[#allocation7] sm:$0xf]
        %v828 = vld [vmem:[#allocation7 + $0x4] sm:$0xf]
        %v829 = vld [vmem:[#allocation7 + $0x8] sm:$0xf]
        %v830 = vld [vmem:[#allocation7 + $0xc] sm:$0xf]
        %v831 = vld [vmem:[%s4] sm:$0x1]
        %v833 = vlaneseq
        %v834 = vshrl.u32 %v833, 7
        %v835 = vsub.s32 0, %v834
        %v836 = vrot.slane %v831, %v835
        %v842 = vunpack.c.l.b16 %v827
        %v843 = vunpack.c.l.b16 %v828
        %v844 = vunpack.c.l.b16 %v829
        %v845 = vunpack.c.l.b16 %v830
        %v846 = vpack.c.b16 %v843, %v842
        %v847 = vpack.c.b16 %v845, %v844
        %v851 = vsel %vm294, %v826, 0
        %853 = vmatprep.subr.bf16.mxu0 0
        %854 = vmatpush1.bf16.msra.mxu0 %v846
        %855 = vmatprep.subr.bf16.mxu0 0
        %856 = vmatpush1.bf16.msra.mxu0 %v847
        %857 = vmatprep.subr.bf16.mxu0 0
        %858 = vmatpush1.bf16.msra.mxu0 0
        %859 = vmatprep.subr.bf16.mxu0 0
        %860 = vmatpush1.bf16.msra.mxu0 0
        %861 = vmatprep.subr.bf16.mxu0 0
        %862 = vmatpush1.bf16.msra.mxu0 0
        %863 = vmatprep.subr.bf16.mxu0 0
        %864 = vmatpush1.bf16.msra.mxu0 0
        %865 = vmatprep.subr.bf16.mxu0 0
        %866 = vmatpush1.bf16.msra.mxu0 0
        %867 = vmatprep.subr.bf16.mxu0 0
        %868 = vmatpush1.bf16.msra.mxu0 0
        %869 = vmatprep.subr.bf16.mxu0 0
        %870 = vmatpush1.bf16.msra.mxu0 0
        %871 = vmatprep.subr.bf16.mxu0 0
        %872 = vmatpush1.bf16.msra.mxu0 0
        %873 = vmatprep.subr.bf16.mxu0 0
        %874 = vmatpush1.bf16.msra.mxu0 0
        %875 = vmatprep.subr.bf16.mxu0 0
        %876 = vmatpush1.bf16.msra.mxu0 0
        %877 = vmatprep.subr.bf16.mxu0 0
        %878 = vmatpush1.bf16.msra.mxu0 0
        %879 = vmatprep.subr.bf16.mxu0 0
        %880 = vmatpush1.bf16.msra.mxu0 0
        %881 = vmatprep.subr.bf16.mxu0 0
        %882 = vmatpush1.bf16.msra.mxu0 0
        %883 = vmatprep.subr.bf16.mxu0 0
        %884 = vmatpush1.bf16.msra.mxu0 0
        %885 = vmatprep.mubr.bf16.mxu0 0
        %886 = vmatmul.mubr.bf16.gmra.mrb[0].mxu0 %v851
        %v887 = vpop.f32.mrb[0].mxu0
        %v888 = vadd.f32 %v836, %v887
        %v889 = vpop.f32.mrb[0].mxu0
        %v890 = vpop.f32.mrb[0].mxu0
        %v891 = vpop.f32.mrb[0].mxu0
        %892 = vdwg.mxu0
        %893 = vst.msk [vmem:[%s268] sm:$0xff] %vm294, %v888
        %s894 = sand.u32 %s141, 1
        %s895 = scalar_lea.sflag [#allocation4], %s894
        %s896 = sand.u32 %s141, 1
        %s897 = smul.addr %s896, 8
        %s898 = scalar_lea.vmem [#allocation8], %s897
        // Predicated region
        $region53: #{tpu_custom_call.1} parent=39 // pred_check
          %p899 = pneg %p151
        $region54: #{tpu_custom_call.1} parent=39 // pred_check_branch
          %901 = sbr.rel (%p899) target = $region56
        $region55: #{tpu_custom_call.1} parent=39 // pred_region
          %s903 = ssub.s32 128, 128
          %904 = vsyncadd %s895, %s903
          %s905 = smul.addr %s23, 128
          %s906 = scalar_lea.hbm %s5, %s905
          %s908 = sshll.u32 %s898, 4
          %s909 = int_to_ptr.vmem [resolvable:$true] %s908
          %911 = dma.vmem_to_hbm [thread:$0]  %s909, 128, %s906, %s895
        $region56: #{tpu_custom_call.1} parent=39 // pred_fallthru
          _
      $region40: #{tpu_custom_call.1} parent=5 // pred_fallthru
        _
      %p912 = scmp.le.s32.totalorder 2, %s18
      // Predicated region
      $region57: #{tpu_custom_call.1} parent=5 // pred_check
        %p913 = pneg %p912
      $region58: #{tpu_custom_call.1} parent=5 // pred_check_branch
        %915 = sbr.rel (%p913) target = $region60
      $region59: #{tpu_custom_call.1} parent=5 // pred_region
        %s916 = ssub.s32 %s18, 2
        // Predicated region
        $region61: #{tpu_custom_call.1} parent=59 // pred_check
          %p917 = pneg %p157
        $region62: #{tpu_custom_call.1} parent=59 // pred_check_branch
          %919 = sbr.rel (%p917) target = $region64
        $region63: #{tpu_custom_call.1} parent=59 // pred_region
          %s920 = sand.u32 %s142, 1
          %s921 = scalar_lea.sflag [#allocation4], %s920
          %s922 = sand.u32 %s142, 1
          %s923 = smul.addr %s922, 8
          %s924 = scalar_lea.vmem [#allocation8], %s923
          %925 = dma.done %s921, 128
        $region64: #{tpu_custom_call.1} parent=59 // pred_fallthru
          _
      $region60: #{tpu_custom_call.1} parent=5 // pred_fallthru
        _
    $region6: #{tpu_custom_call.1} parent=1 // loop_footer
      %s22 = sadd.s32 1, %s18
    $region7: #{tpu_custom_call.1} parent=1 // loop_footer_branch
      %17 = sbr.rel target = $region3
    $region8: #{tpu_custom_call.1} parent=1 // loop_exit
      _
    %926 = vsyncpa [#allocation3], 1
    %s927 = scalar_lea.sflag [#allocation3], 1
    %928 = vsyncpa %s927, 1
    %929 = vsyncpa [#allocation6], 1
    %930 = vsyncpa [#allocation4], 1
    %s931 = scalar_lea.sflag [#allocation4], 1
    %932 = vsyncpa %s931, 1

</llo_original>
